<compile_context>
chip_gen: v7x
topology: tpu7x:2x2x1
jax: 0.10.0
libtpu: 0.0.40
codegen_flags: <defaults>
</compile_context>

<pallas_src>
import functools

import jax
import jax.numpy as jnp
from jax import lax
from jax.experimental import pallas as pl
from jax.experimental.pallas import tpu as pltpu


def _round_up(v, m):
    return (v + m - 1) // m * m


# --------------------------------------------------------------------------------------
# Preamble: row-wise L2 normalization (used once for x and once for W).
# --------------------------------------------------------------------------------------
def _l2_normalize_kernel(x_ref, o_ref):
    x = x_ref[...].astype(jnp.float32)
    # F.normalize(p=2, dim=1): x / max(||x||, 1e-12)  ==  x * rsqrt(max(sum(x^2), 1e-24))
    inv = lax.rsqrt(jnp.maximum(jnp.sum(x * x, axis=1, keepdims=True), 1e-24))
    o_ref[...] = (x * inv).astype(o_ref.dtype)


def _l2_normalize_rows(x, row_tile, out_dtype):
    R, E = x.shape
    return pl.pallas_call(
        _l2_normalize_kernel,
        out_shape=jax.ShapeDtypeStruct((R, E), out_dtype),
        grid=(R // row_tile,),
        in_specs=[pl.BlockSpec((row_tile, E), lambda i: (i, 0))],
        out_specs=pl.BlockSpec((row_tile, E), lambda i: (i, 0)),
        compiler_params=pltpu.CompilerParams(dimension_semantics=("parallel",)),
    )(x)


# --------------------------------------------------------------------------------------
# Main tiled kernel: cosine matmul + angular-margin softmax loss.
# --------------------------------------------------------------------------------------
def _angular_margin_kernel(lab_ref, xn_ref, wn_ref,            # inputs
                           cos_ref, rowloss_ref,               # outputs
                           m_scr, l_scr, t_scr,                # VMEM scratch (B_tile, 1)
                           *, loss_type, scale, margin, eps, num_classes, block_c):
    c = pl.program_id(1)

    @pl.when(c == 0)
    def _init():
        m_scr[...] = jnp.full_like(m_scr, -1e30)
        l_scr[...] = jnp.zeros_like(l_scr)
        t_scr[...] = jnp.zeros_like(t_scr)

    # (B_tile, C_tile) cosine tile: bf16 operands, f32 accumulation on the MXU.
    # Contraction over E of both operands -> no transpose of the W tile.
    cosine = lax.dot_general(
        xn_ref[...], wn_ref[...],
        dimension_numbers=(((1,), (1,)), ((), ())),
        preferred_element_type=jnp.float32)
    cos_ref[...] = cosine

    bb, bc = cosine.shape
    col = jax.lax.broadcasted_iota(jnp.int32, (bb, bc), 1) + c * block_c   # global class id
    class_valid = col < num_classes          # mask padded class columns
    onehot = col == lab_ref[...]             # (bb, bc) target-class mask

    # Target cosine gather: exactly one column over the whole C sweep matches per row.
    t_scr[...] += jnp.sum(jnp.where(onehot, cosine, 0.0), axis=1, keepdims=True)

    # Online (max-subtracted) accumulation of sum_j exp(scale * cos_j) over ALL classes.
    s = jnp.where(class_valid, scale * cosine, -1e30)
    m_old = m_scr[...]
    m_new = jnp.maximum(m_old, jnp.max(s, axis=1, keepdims=True))
    l_scr[...] = l_scr[...] * jnp.exp(m_old - m_new) + \
                 jnp.sum(jnp.exp(s - m_new), axis=1, keepdims=True)
    m_scr[...] = m_new

    @pl.when(c == pl.num_programs(1) - 1)
    def _finalize():
        t = t_scr[...]
        m = m_scr[...]
        l = l_scr[...]
        if loss_type == "cosface":
            num = scale * (t - margin)
        elif loss_type == "arcface":
            tc = jnp.clip(t, -1.0 + eps, 1.0 - eps)
            # scale * cos(acos(t) + m) == scale * (t*cos(m) - sqrt(1-t^2)*sin(m))
            num = scale * (tc * jnp.cos(margin) - jnp.sqrt(1.0 - tc * tc) * jnp.sin(margin))
        elif loss_type == "sphereface":
            tc = jnp.clip(t, -1.0 + eps, 1.0 - eps)
            # TODO(synk): jnp.arccos may not lower on all Mosaic versions; cosface/arcface exact.
            num = scale * jnp.cos(margin * jnp.arccos(tc))
        else:
            raise NotImplementedError(loss_type)
        # denominator = exp(num) + sum_{j != y} exp(scale*cos_j)
        #             = exp(m) * (exp(num - m) + l - exp(scale*t - m))      (stable form)
        sum_excl = l - jnp.exp(scale * t - m)
        rowloss_ref[...] = num - (m + jnp.log(jnp.exp(num - m) + sum_excl))


_DEFAULTS = {"arcface": (64.0, 0.5), "sphereface": (64.0, 1.35), "cosface": (30.0, 0.4)}


def angular_penalty_sm_loss(x, weight, label, *, loss_type="cosface",
                            scale=None, margin=None, eps=1e-7,
                            block_b=128, block_c=512, use_bf16_mxu=True):
    loss_type = loss_type.lower()
    d_scale, d_margin = _DEFAULTS[loss_type]
    scale = float(d_scale if scale is None else scale)
    margin = float(d_margin if margin is None else margin)

    B, E = x.shape
    C, E2 = weight.shape
    assert E == E2

    # ---- tile selection / padding (E lane-aligned, B mult of 8, C mult of 128) ------
    E_pad = _round_up(max(E, 128), 128)
    bb = min(block_b, _round_up(B, 8))        # batch tile
    bc = min(block_c, _round_up(C, 128))      # class tile (lane-dense output)
    B_pad = _round_up(B, bb)
    C_pad = _round_up(C, bc)

    x_p = jnp.pad(x.astype(jnp.float32), ((0, B_pad - B), (0, E_pad - E)))
    w_p = jnp.pad(weight.astype(jnp.float32), ((0, C_pad - C), (0, E_pad - E)))
    lab_p = jnp.pad(label.astype(jnp.int32), (0, B_pad - B)).reshape(B_pad, 1)

    mxu_dtype = jnp.bfloat16 if use_bf16_mxu else jnp.float32

    # ---- preamble: normalize x and W once (not once per B tile) ---------------------
    xn = _l2_normalize_rows(x_p, bb, mxu_dtype)
    wn = _l2_normalize_rows(w_p, bc, mxu_dtype)

    kernel = functools.partial(
        _angular_margin_kernel, loss_type=loss_type, scale=scale, margin=margin,
        eps=eps, num_classes=C, block_c=bc)

    nb, nc = B_pad // bb, C_pad // bc

    elem = 2 if use_bf16_mxu else 4
    vmem_est = 2 * (bb * E_pad * elem + bc * E_pad * elem + bb * bc * 4 + 2 * bb * 4) \
        + 3 * bb * 4
    vmem_limit = int(min(96 * 2**20, max(8 * 2**20, 2 * vmem_est)))

    cos_p, rowloss_p = pl.pallas_call(
        kernel,
        out_shape=(jax.ShapeDtypeStruct((B_pad, C_pad), jnp.float32),
                   jax.ShapeDtypeStruct((B_pad, 1), jnp.float32)),
        grid_spec=pltpu.PrefetchScalarGridSpec(
            num_scalar_prefetch=0,
            grid=(nb, nc),
            in_specs=[pl.BlockSpec((bb, 1), lambda b, c: (b, 0)),       # labels
                      pl.BlockSpec((bb, E_pad), lambda b, c: (b, 0)),   # normalized x
                      pl.BlockSpec((bc, E_pad), lambda b, c: (c, 0))],  # normalized W
            out_specs=[pl.BlockSpec((bb, bc), lambda b, c: (b, c)),     # cosine
                       pl.BlockSpec((bb, 1), lambda b, c: (b, 0))],     # per-row loss
            scratch_shapes=[pltpu.VMEM((bb, 1), jnp.float32),           # running max
                            pltpu.VMEM((bb, 1), jnp.float32),           # running exp-sum
                            pltpu.VMEM((bb, 1), jnp.float32)]),         # target cosine
        compiler_params=pltpu.CompilerParams(
            dimension_semantics=("parallel", "arbitrary"),
            vmem_limit_bytes=vmem_limit),
    )(lab_p, xn, wn)

    loss = -jnp.mean(rowloss_p[:B, 0])
    cosine = cos_p[:B, :C]
    return loss, cosine


# --------------------------------------------------------------------------------------
# Pure-JAX reference (mirrors the PyTorch module).
# --------------------------------------------------------------------------------------
def _reference(x, weight, label, *, loss_type, scale, margin, eps=1e-7,
               mxu_dtype=jnp.float32):
    xn = x * lax.rsqrt(jnp.maximum(jnp.sum(x * x, axis=1, keepdims=True), 1e-24))
    wn = weight * lax.rsqrt(jnp.maximum(jnp.sum(weight * weight, axis=1, keepdims=True), 1e-24))
    cosine = jnp.dot(xn.astype(mxu_dtype), wn.astype(mxu_dtype).T,
                     preferred_element_type=jnp.float32)
    tgt = cosine[jnp.arange(x.shape[0]), label]
    if loss_type == "cosface":
        num = scale * (tgt - margin)
    elif loss_type == "arcface":
        tc = jnp.clip(tgt, -1.0 + eps, 1.0 - eps)
        num = scale * jnp.cos(jnp.arccos(tc) + margin)
    else:  # sphereface
        tc = jnp.clip(tgt, -1.0 + eps, 1.0 - eps)
        num = scale * jnp.cos(margin * jnp.arccos(tc))
    onehot = jax.nn.one_hot(label, weight.shape[0], dtype=jnp.float32)
    sum_excl = jnp.sum(jnp.exp(scale * cosine) * (1.0 - onehot), axis=1)
    loss = num - jnp.log(jnp.exp(num) + sum_excl)
    return -jnp.mean(loss), cosine


if __name__ == "__main__":
    B, E, C = 8, 32, 16  # batch, embedding_size, num_classes

    key = jax.random.PRNGKey(0)
    kx, kw, kl = jax.random.split(key, 3)

    x = jax.random.normal(kx, (B, E), dtype=jnp.float32)
    # Xavier-uniform init for weight of shape (num_classes, embedding_size)
    bound = (6.0 / (C + E)) ** 0.5
    weight = jax.random.uniform(kw, (C, E), minval=-bound, maxval=bound, dtype=jnp.float32)
    label = jax.random.randint(kl, (B,), 0, C, dtype=jnp.int32)

    loss, cosine = angular_penalty_sm_loss(x, weight, label, loss_type="cosface")
    jax.block_until_ready((loss, cosine))

    # Tight check vs. a reference using the same bf16 MXU operands (validates kernel logic).
    ref_loss_bf, ref_cos_bf = _reference(x, weight, label, loss_type="cosface",
                                         scale=30.0, margin=0.4, mxu_dtype=jnp.bfloat16)
    assert jnp.allclose(cosine, ref_cos_bf, atol=2e-3), "cosine mismatch (bf16 ref)"
    assert jnp.allclose(loss, ref_loss_bf, rtol=5e-3, atol=5e-3), "loss mismatch (bf16 ref)"

    # Loose check vs. exact-f32 PyTorch-equivalent math (difference = bf16 MXU rounding only).
    ref_loss_f32, ref_cos_f32 = _reference(x, weight, label, loss_type="cosface",
                                           scale=30.0, margin=0.4, mxu_dtype=jnp.float32)
    assert jnp.allclose(cosine, ref_cos_f32, atol=2e-2), "cosine mismatch (f32 ref)"
    assert jnp.allclose(loss, ref_loss_f32, rtol=5e-2, atol=5e-2), "loss mismatch (f32 ref)"

    print("KERNEL_OK")
</pallas_src>

<mosaic_0001>
module attributes {stable_mosaic.version = 11 : i64} {
  func.func @_l2_normalize_kernel(%arg0: i32, %arg1: memref<8x128xf32, #tpu.memory_space<vmem>>, %arg2: memref<8x128xbf16, #tpu.memory_space<vmem>>) attributes {dimension_semantics = [#tpu.dimension_semantics<parallel>], iteration_bounds = array<i64: 1>, scalar_prefetch = 0 : i64, scratch_operands = 0 : i64, tpu.core_type = #tpu.core_type<tc>, window_params = [{transform_indices = @transform_0, window_bounds = array<i64: 8, 128>}, {transform_indices = @transform_1, window_bounds = array<i64: 8, 128>}]} {
    %c0 = arith.constant 0 : index
    %c0_0 = arith.constant 0 : index
    %0 = vector.load %arg1[%c0, %c0_0] : memref<8x128xf32, #tpu.memory_space<vmem>>, vector<8x128xf32>
    %1 = arith.mulf %0, %0 : vector<8x128xf32>
    %cst = arith.constant dense<0.000000e+00> : vector<8xf32>
    %2 = vector.multi_reduction <add>, %1, %cst [1] : vector<8x128xf32> to vector<8xf32>
    %3 = vector.shape_cast %2 : vector<8xf32> to vector<8x1xf32>
    %cst_1 = arith.constant 1.000000e-24 : f32
    %4 = vector.broadcast %cst_1 : f32 to vector<8x1xf32>
    %5 = arith.maximumf %3, %4 : vector<8x1xf32>
    %6 = math.rsqrt %5 : vector<8x1xf32>
    %7 = vector.broadcast %6 : vector<8x1xf32> to vector<8x128xf32>
    %8 = arith.mulf %0, %7 : vector<8x128xf32>
    %9 = arith.truncf %8 : vector<8x128xf32> to vector<8x128xbf16>
    %c0_2 = arith.constant 0 : index
    %c0_3 = arith.constant 0 : index
    %10 = vector.load %arg2[%c0_2, %c0_3] : memref<8x128xbf16, #tpu.memory_space<vmem>>, vector<8x128xbf16>
    tpu.vector_store %arg2[%c0_2, %c0_3], %9 {strides = array<i32>} : memref<8x128xbf16, #tpu.memory_space<vmem>>, vector<8x128xbf16>,
    return
  }
  func.func @transform_0(%arg0: i32) -> (i32, i32) {
    %c0_i32 = arith.constant 0 : i32
    %c0_i32_0 = arith.constant 0 : i32
    return %arg0, %c0_i32 : i32, i32
  }
  func.func @transform_1(%arg0: i32) -> (i32, i32) {
    %c0_i32 = arith.constant 0 : i32
    %c0_i32_0 = arith.constant 0 : i32
    return %arg0, %c0_i32 : i32, i32
  }
}

</mosaic_0001>

<llo_original>
// kernel: tpu_custom_call.1
$region0: #{tpu_custom_call.1}
  #allocation0 [shape = 'u32[]', space=smem, size = 0x4, offset = 0x4, fixed_abs, tag = 'smem constant byte address 0x4 - core index']
  #allocation1 [shape = 'u32[144,128]{1,0:T(1,128)}', space=vmem, size = 0x12000, scoped, tag = 'internal scratch']
  %s0 = inlined_call_operand.hbm [shape: f32[8,128], index: 0, kind: input, shape index: {}]
  %s1 = inlined_call_operand.hbm [shape: bf16[8,128], index: 1, kind: output, shape index: {}]
  %s2 = sld [smem:[#allocation0]]
  $region18: #{tpu_custom_call.1} parent=0
    _
  %s4 = ssub.s32 1, %s2
  %s5 = scalar_select 0, %s4, %s2
  $region1: #{tpu_custom_call.1} parent=0
    #allocation2 [shape = 'u8[4096]{0}', space=vmem, size = 0x1000, scoped, tag = 'input window, operand 0, single buffered']
    #allocation3 [shape = 's32[1]{0}', space=sflag, size = 0x4, scoped, tag = 'scoped memory for tpu_custom_call.1']
    #allocation4 [shape = 's32[1]{0}', space=sflag, size = 0x4, scoped, tag = 'scoped memory for tpu_custom_call.1']
    #allocation5 [shape = 'u8[2048]{0}', space=vmem, size = 0x800, scoped, tag = 'output window, operand 0, single buffered']
    %6 = vsyncpa [#allocation3], 0
    %7 = vsyncpa [#allocation4], 0
    // Predicated region
    $region2: #{tpu_custom_call.1} parent=1 // pred_check
      _
    $region3: #{tpu_custom_call.1} parent=1 // pred_check_branch
      %9 = sbr.rel (0) target = $region5
    $region4: #{tpu_custom_call.1} parent=1 // pred_region
      %s11 = ssub.s32 128, 128
      %12 = vsyncadd [#allocation3], %s11
      %s14 = sshll.u32 [#allocation2], 4
      %s15 = int_to_ptr.vmem [resolvable:$true] %s14
      %17 = dma.hbm_to_vmem [thread:$0]  %s0, 128, %s15, [#allocation3]
    $region5: #{tpu_custom_call.1} parent=1 // pred_fallthru
      _
    // Predicated region
    $region6: #{tpu_custom_call.1} parent=1 // pred_check
      _
    $region7: #{tpu_custom_call.1} parent=1 // pred_check_branch
      %19 = sbr.rel (0) target = $region9
    $region8: #{tpu_custom_call.1} parent=1 // pred_region
      %20 = dma.done [#allocation3], 128
    $region9: #{tpu_custom_call.1} parent=1 // pred_fallthru
      _
    %v21 = vld [vmem:[#allocation2] sm:$0xff]
    %v22 = vmul.f32 %v21, %v21
    %23 = vadd.xlane.f32.xlu0 %v22
    %v24 = vpop.xlane.xlu0 %23
    %v25 = vmax.f32 %v24, 1e-24
    %v26 = vrsqrt.pop %v25
    %v27 = vmul.f32 %v21, %v26
    %v28 = vpack.c.bf16 %v27, %v27
    %29 = vst [vmem:[#allocation5] sm:$0xf] %v28
    // Predicated region
    $region10: #{tpu_custom_call.1} parent=1 // pred_check
      _
    $region11: #{tpu_custom_call.1} parent=1 // pred_check_branch
      %31 = sbr.rel (0) target = $region13
    $region12: #{tpu_custom_call.1} parent=1 // pred_region
      %s33 = ssub.s32 64, 64
      %34 = vsyncadd [#allocation4], %s33
      %s36 = sshll.u32 [#allocation5], 4
      %s37 = int_to_ptr.vmem [resolvable:$true] %s36
      %39 = dma.vmem_to_hbm [thread:$0]  %s37, 64, %s1, [#allocation4]
    $region13: #{tpu_custom_call.1} parent=1 // pred_fallthru
      _
    // Predicated region
    $region14: #{tpu_custom_call.1} parent=1 // pred_check
      _
    $region15: #{tpu_custom_call.1} parent=1 // pred_check_branch
      %41 = sbr.rel (0) target = $region17
    $region16: #{tpu_custom_call.1} parent=1 // pred_region
      %42 = dma.done [#allocation4], 64
    $region17: #{tpu_custom_call.1} parent=1 // pred_fallthru
      _
    %43 = vsyncpa [#allocation3], 1
    %44 = vsyncpa [#allocation4], 1

</llo_original>
